<compile_context>
chip_gen: v7x
topology: tpu7x:2x2x1
jax: 0.10.0
libtpu: 0.0.40
codegen_flags: <defaults>
</compile_context>

<pallas_src>
import functools
import math

import jax
import jax.numpy as jnp
from jax.experimental import pallas as pl
from jax.experimental.pallas import tpu as pltpu


def _eca_kernel_size(channels: int) -> int:
    kernel = math.ceil(math.log(channels, 2) / 2 + 0.5)
    if kernel % 2 == 0:
        kernel -= 1
    return int(kernel)


# ---------------------------------------------------------------------------
# In-kernel helpers
# ---------------------------------------------------------------------------


def _channel_conv_sigmoid(y, w_ref, c):
    """sigmoid(conv1d over the channel axis, k taps, zero padding).

    y:     (bb, C, 1) float32 pooled means; C lives on the sublane axis.
    w_ref: (k,)       float32 taps resident in SMEM (read as scalars).

    Implemented as a k-tap MAC over zero-padded shifted copies of y (concat +
    static slices along C).  Pure VPU/XLU work on a tiny vector; no band matrix.
    """
    k = w_ref.shape[0]
    pad = (k - 1) // 2
    if pad > 0:
        z = jnp.zeros((y.shape[0], pad, 1), jnp.float32)
        ypad = jnp.concatenate([z, y, z], axis=1)            # (bb, C + 2*pad, 1)
    else:
        ypad = y
    yc = w_ref[0] * jax.lax.slice_in_dim(ypad, 0, c, axis=1)
    for t in range(1, k):                                    # k is tiny (1/3/5), static
        yc = yc + w_ref[t] * jax.lax.slice_in_dim(ypad, t, t + c, axis=1)
    return jax.nn.sigmoid(yc)


def _eca_fused_kernel(w_ref, x_ref, o_ref, *, hw, c):
    """Single-pass ECA on a (bb, C, HW) block: pool -> conv -> sigmoid -> rescale.

    One HBM read + one write of the block.  Vectorized over the whole batch
    block (no per-row Python unroll); the spatial mean accumulates in f32.
    """
    x = x_ref[...]                                           # (bb, C, HW)
    y = jnp.sum(x, axis=2, keepdims=True, dtype=jnp.float32) * (1.0 / hw)
    s = _channel_conv_sigmoid(y, w_ref, c)                   # (bb, C, 1) f32
    o_ref[...] = (x * s.astype(x.dtype)).astype(o_ref.dtype)


def _eca_pool_kernel(w_ref, x_ref, acc_ref, *, hw, c, thw):
    """Two-pass path, pass 1: HW-tiled pooling reduction, then conv + sigmoid.

    Grid (batch, hw_tiles); the hw axis is the innermost 'arbitrary' reduction
    and the (1, C, 1) f32 output block is revisited across hw tiles.
    """
    j = pl.program_id(1)

    @pl.when(j == 0)
    def _init():
        acc_ref[...] = jnp.zeros_like(acc_ref)

    x = x_ref[...]                                           # (1, C, thw)
    if hw % thw != 0:
        # Ragged last tile: zero lanes past HW before accumulating.
        col = jax.lax.broadcasted_iota(jnp.int32, x.shape, dimension=2)
        x = jnp.where(j * thw + col < hw, x, jnp.zeros((), x.dtype))
    acc_ref[...] += jnp.sum(x, axis=2, keepdims=True, dtype=jnp.float32)

    @pl.when(j == pl.num_programs(1) - 1)
    def _finalize():
        y = acc_ref[...] * (1.0 / hw)                        # (1, C, 1) mean
        acc_ref[...] = _channel_conv_sigmoid(y, w_ref, c)


def _eca_apply_kernel(scale_ref, x_ref, o_ref):
    """Two-pass path, pass 2: out = x * sigmoid_scale (broadcast over HW lanes)."""
    s = scale_ref[...].astype(o_ref.dtype)                   # (1, C, 1)
    o_ref[...] = (x_ref[...] * s).astype(o_ref.dtype)


# ---------------------------------------------------------------------------
# Host-side sizing helpers
# ---------------------------------------------------------------------------

_FUSED_STEP_PLANE_TARGET = 2 * 2**20    # ~2 MiB of x per fused grid step (~8 MiB footprint)
_STREAM_STEP_TARGET = 8 * 2**20         # per-step buffer footprint target on streaming passes


def _vmem_budget():
    """Generation-aware (fused_threshold_bytes, vmem_limit_cap_bytes)."""
    try:
        cap = int(pltpu.get_tpu_info().vmem_capacity_bytes)
    except Exception:
        cap = 64 * 2**20                                     # conservative: v7x-sized part
    if cap >= 96 * 2**20:                                    # 128 MiB parts (v5e / v6e)
        return 96 * 2**20, 104 * 2**20
    return 40 * 2**20, 50 * 2**20                            # 64 MiB part (v7x): keep headroom


def _compiler_params(semantics, buffer_bytes, vmem_cap):
    limit = int(min(vmem_cap, max(16 * 2**20, buffer_bytes + (2 << 20))))
    return pltpu.CompilerParams(dimension_semantics=semantics,
                                vmem_limit_bytes=limit)


def _pick_hw_tile(hw, max_lanes):
    """Largest lane-aligned (multiple of 128) tile <= max_lanes; prefer one dividing hw."""
    if max_lanes >= hw:
        return hw
    t = max(128, (max_lanes // 128) * 128)
    if t >= hw:
        return hw
    for cand in range(t, 127, -128):                         # prefer no ragged tail
        if hw % cand == 0:
            return cand
    return t


# ---------------------------------------------------------------------------
# Forward
# ---------------------------------------------------------------------------


def eca_layer_bchw(x3, conv_weight, *, force_two_pass=False, hw_tile=None,
                   donate_x=False):
    """ECA forward on x3: (B, C, HW) -> (B, C, HW). C on sublanes, HW on lanes."""
    b, c, hw = x3.shape
    itemsize = x3.dtype.itemsize
    w_taps = jnp.asarray(conv_weight, jnp.float32).reshape(-1)     # (k,)
    k = int(w_taps.shape[0])
    w_spec = pl.BlockSpec(memory_space=pltpu.MemorySpace.SMEM)

    fused_threshold, vmem_cap = _vmem_budget()
    plane_bytes = c * hw * itemsize
    fused_footprint = 4 * plane_bytes            # bb=1: double-buffered in + out blocks

    use_two_pass = (force_two_pass or hw_tile is not None
                    or fused_footprint > fused_threshold)

    if not use_two_pass:
        # ---- fused single-read path (whole plane(s) resident per grid step) ----
        # bb sized for pipelining, not maximal residency: ~2 MiB of x per step and
        # keep >= min(b, 4) grid steps so the pipeline overlaps and megacore (v7x)
        # has something to shard.
        bb_cap = max(1, _FUSED_STEP_PLANE_TARGET // plane_bytes)
        bb_cap = min(bb_cap, max(1, b // min(b, 4)))
        bb = 1
        for d in range(2, int(bb_cap) + 1):      # largest divisor of b <= bb_cap
            if b % d == 0:
                bb = d
        return pl.pallas_call(
            functools.partial(_eca_fused_kernel, hw=hw, c=c),
            out_shape=jax.ShapeDtypeStruct((b, c, hw), x3.dtype),
            grid_spec=pltpu.PrefetchScalarGridSpec(
                num_scalar_prefetch=0,
                grid=(b // bb,),
                in_specs=[w_spec,
                          pl.BlockSpec((bb, c, hw), lambda i: (i, 0, 0))],
                out_specs=pl.BlockSpec((bb, c, hw), lambda i: (i, 0, 0)),
            ),
            compiler_params=_compiler_params(("parallel",), 4 * bb * plane_bytes,
                                             vmem_cap),
            cost_estimate=pl.CostEstimate(
                flops=3 * b * hw * c, transcendentals=b * c,
                bytes_accessed=2 * b * plane_bytes + k * 4),
            input_output_aliases=({1: 0} if donate_x else {}),
        )(w_taps, x3)

    # ---- two-pass path: bounded VMEM for big planes --------------------------
    if hw_tile is not None:
        thw_pool = thw_apply = int(hw_tile)      # must be a multiple of 128 or == hw
    else:
        # Pass 1 only double-buffers its input (output block is a tiny (1,C,1)),
        # so its tile can be ~2x the apply-pass tile for the same VMEM.
        thw_pool = _pick_hw_tile(hw, max(128, _STREAM_STEP_TARGET // (2 * c * itemsize)))
        thw_apply = _pick_hw_tile(hw, max(128, _STREAM_STEP_TARGET // (4 * c * itemsize)))

    # Pass 1: HW-tiled pooling reduction + channel conv + sigmoid -> (B, C, 1) f32.
    n_pool = pl.cdiv(hw, thw_pool)
    scale = pl.pallas_call(
        functools.partial(_eca_pool_kernel, hw=hw, c=c, thw=thw_pool),
        out_shape=jax.ShapeDtypeStruct((b, c, 1), jnp.float32),
        grid_spec=pltpu.PrefetchScalarGridSpec(
            num_scalar_prefetch=0,
            grid=(b, n_pool),
            in_specs=[w_spec,
                      pl.BlockSpec((1, c, thw_pool), lambda bi, j: (bi, 0, j))],
            out_specs=pl.BlockSpec((1, c, 1), lambda bi, j: (bi, 0, 0)),
        ),
        compiler_params=_compiler_params(("parallel", "arbitrary"),
                                         2 * c * thw_pool * itemsize, vmem_cap),
        cost_estimate=pl.CostEstimate(
            flops=2 * b * hw * c, transcendentals=b * c,
            bytes_accessed=b * plane_bytes + b * c * 4 + k * 4),
    )(w_taps, x3)

    # Pass 2: out = x * scale (broadcast over HW lanes), fully parallel grid.
    n_apply = pl.cdiv(hw, thw_apply)
    return pl.pallas_call(
        _eca_apply_kernel,
        out_shape=jax.ShapeDtypeStruct((b, c, hw), x3.dtype),
        grid_spec=pltpu.PrefetchScalarGridSpec(
            num_scalar_prefetch=0,
            grid=(b, n_apply),
            in_specs=[pl.BlockSpec((1, c, 1), lambda bi, j: (bi, 0, 0)),
                      pl.BlockSpec((1, c, thw_apply), lambda bi, j: (bi, 0, j))],
            out_specs=pl.BlockSpec((1, c, thw_apply), lambda bi, j: (bi, 0, j)),
        ),
        compiler_params=_compiler_params(("parallel", "parallel"),
                                         4 * c * thw_apply * itemsize, vmem_cap),
        cost_estimate=pl.CostEstimate(
            flops=b * hw * c, transcendentals=0,
            bytes_accessed=2 * b * plane_bytes + b * c * 4),
        input_output_aliases=({1: 0} if donate_x else {}),
    )(scale, x3)


def eca_layer(x, conv_weight, *, force_two_pass=False, hw_tile=None, donate_x=False):
    """NCHW entry point matching the PyTorch module: x (B, C, H, W).

    The (B, C, H, W) -> (B, C, HW) reshape is a free view — no transpose and no
    extra HBM traffic — so the kernel's 1 read + 1 write of x is all the traffic.
    """
    b, c, h, w = x.shape
    out3 = eca_layer_bchw(x.reshape(b, c, h * w), conv_weight,
                          force_two_pass=force_two_pass, hw_tile=hw_tile,
                          donate_x=donate_x)
    return out3.reshape(b, c, h, w)


# ---------------------------------------------------------------------------
# Plain-JAX reference (mirrors the PyTorch forward exactly)
# ---------------------------------------------------------------------------


def _build_band_matrix(w, channels):
    k = w.shape[0]
    pad = (k - 1) // 2
    idx = jnp.arange(channels)
    t = idx[None, :] - idx[:, None] + pad                    # tap index for each (i, j)
    valid = (t >= 0) & (t < k)
    return jnp.where(valid, w[jnp.clip(t, 0, k - 1)], 0.0).astype(jnp.float32)


def _eca_reference(x, conv_weight):
    c = x.shape[1]
    y = jnp.mean(x, axis=(2, 3))                             # adaptive_avg_pool2d(x, 1)
    band = _build_band_matrix(conv_weight, c)
    yc = jnp.einsum("ij,bj->bi", band, y)                    # conv1d over the channel axis
    s = jax.nn.sigmoid(yc)[:, :, None, None]
    return x * s


if __name__ == "__main__":
    B, C, H, W = 2, 64, 16, 16          # hw = 256 (lane-dense); ECA formula -> k = 3
    k = _eca_kernel_size(C)

    key = jax.random.PRNGKey(0)
    kx, kw_key, kx2 = jax.random.split(key, 3)
    x = jax.random.normal(kx, (B, C, H, W), dtype=jnp.float32)
    # nn.Conv1d(1, 1, k, bias=False) weight (1, 1, k) -> flat (k,) taps.
    conv_weight = jax.random.normal(kw_key, (k,), dtype=jnp.float32) * 0.5

    ref = _eca_reference(x, conv_weight)

    # Fused single-read path (plane fits comfortably in VMEM).
    out = eca_layer(x, conv_weight)
    jax.block_until_ready(out)
    assert out.shape == x.shape
    assert jnp.allclose(out, ref, atol=1e-5, rtol=1e-5)

    # Two-pass HW-tiled path (big-plane / VMEM-bounded path), forced here so it
    # is exercised at the small test shape too (tile = 128 lanes, divides hw).
    out2 = eca_layer(x, conv_weight, force_two_pass=True, hw_tile=128)
    jax.block_until_ready(out2)
    assert jnp.allclose(out2, ref, atol=1e-5, rtol=1e-5)

    # Ragged spatial extent (hw = 144 with 128-lane tiles) exercises the
    # pool-pass tail mask and Pallas's partial last block on the apply pass.
    x2 = jax.random.normal(kx2, (B, C, 12, 12), dtype=jnp.float32)
    ref2 = _eca_reference(x2, conv_weight)
    out3 = eca_layer(x2, conv_weight, force_two_pass=True, hw_tile=128)
    jax.block_until_ready(out3)
    assert jnp.allclose(out3, ref2, atol=1e-5, rtol=1e-5)

    print("KERNEL_OK")
</pallas_src>

<mosaic_0001>
module attributes {stable_mosaic.version = 11 : i64} {
  func.func @_eca_fused_kernel(%arg0: i32, %arg1: memref<3xf32, #tpu.memory_space<smem>>, %arg2: memref<1x64x256xf32, #tpu.memory_space<vmem>>, %arg3: memref<1x64x256xf32, #tpu.memory_space<vmem>>) attributes {dimension_semantics = [#tpu.dimension_semantics<parallel>], iteration_bounds = array<i64: 2>, scalar_prefetch = 0 : i64, scratch_operands = 0 : i64, tpu.core_type = #tpu.core_type<tc>, window_params = [{transform_indices = @transform_0, window_bounds = array<i64: 3>}, {transform_indices = @transform_1, window_bounds = array<i64: 1, 64, 256>}, {transform_indices = @transform_2, window_bounds = array<i64: 1, 64, 256>}]} {
    %c0 = arith.constant 0 : index
    %c0_0 = arith.constant 0 : index
    %c0_1 = arith.constant 0 : index
    %0 = vector.load %arg2[%c0, %c0_0, %c0_1] : memref<1x64x256xf32, #tpu.memory_space<vmem>>, vector<1x64x256xf32>
    %cst = arith.constant dense<0.000000e+00> : vector<1x64xf32>
    %1 = vector.multi_reduction <add>, %0, %cst [2] : vector<1x64x256xf32> to vector<1x64xf32>
    %2 = vector.shape_cast %1 : vector<1x64xf32> to vector<1x64x1xf32>
    %cst_2 = arith.constant 3.906250e-03 : f32
    %3 = vector.broadcast %cst_2 : f32 to vector<1x64x1xf32>
    %4 = arith.mulf %2, %3 : vector<1x64x1xf32>
    %cst_3 = arith.constant 0.000000e+00 : f32
    %5 = vector.broadcast %cst_3 : f32 to vector<1x1x1xf32>
    %6 = tpu.concatenate %5, %4, %5 in 1 : vector<1x1x1xf32>, vector<1x64x1xf32>, vector<1x1x1xf32> -> vector<1x66x1xf32>
    %c0_4 = arith.constant 0 : index
    %7 = memref.load %arg1[%c0_4] : memref<3xf32, #tpu.memory_space<smem>>
    %8 = vector.extract_strided_slice %6 {offsets = [0, 0, 0], sizes = [1, 64, 1], strides = [1, 1, 1]} : vector<1x66x1xf32> to vector<1x64x1xf32>
    %9 = vector.broadcast %7 : f32 to vector<1x64x1xf32>
    %10 = arith.mulf %9, %8 : vector<1x64x1xf32>
    %c1 = arith.constant 1 : index
    %11 = memref.load %arg1[%c1] : memref<3xf32, #tpu.memory_space<smem>>
    %12 = vector.extract_strided_slice %6 {offsets = [0, 1, 0], sizes = [1, 64, 1], strides = [1, 1, 1]} : vector<1x66x1xf32> to vector<1x64x1xf32>
    %13 = vector.broadcast %11 : f32 to vector<1x64x1xf32>
    %14 = arith.mulf %13, %12 : vector<1x64x1xf32>
    %15 = arith.addf %10, %14 : vector<1x64x1xf32>
    %c2 = arith.constant 2 : index
    %16 = memref.load %arg1[%c2] : memref<3xf32, #tpu.memory_space<smem>>
    %17 = vector.extract_strided_slice %6 {offsets = [0, 2, 0], sizes = [1, 64, 1], strides = [1, 1, 1]} : vector<1x66x1xf32> to vector<1x64x1xf32>
    %18 = vector.broadcast %16 : f32 to vector<1x64x1xf32>
    %19 = arith.mulf %18, %17 : vector<1x64x1xf32>
    %20 = arith.addf %15, %19 : vector<1x64x1xf32>
    %21 = arith.negf %20 : vector<1x64x1xf32>
    %22 = math.exp %21 : vector<1x64x1xf32>
    %cst_5 = arith.constant 1.000000e+00 : f32
    %23 = vector.broadcast %cst_5 : f32 to vector<1x64x1xf32>
    %24 = arith.addf %23, %22 : vector<1x64x1xf32>
    %25 = arith.divf %23, %24 : vector<1x64x1xf32>
    %26 = vector.broadcast %25 : vector<1x64x1xf32> to vector<1x64x256xf32>
    %27 = arith.mulf %0, %26 : vector<1x64x256xf32>
    %c0_6 = arith.constant 0 : index
    %c0_7 = arith.constant 0 : index
    %c0_8 = arith.constant 0 : index
    %28 = vector.load %arg3[%c0_6, %c0_7, %c0_8] : memref<1x64x256xf32, #tpu.memory_space<vmem>>, vector<1x64x256xf32>
    tpu.vector_store %arg3[%c0_6, %c0_7, %c0_8], %27 {strides = array<i32>} : memref<1x64x256xf32, #tpu.memory_space<vmem>>, vector<1x64x256xf32>,
    return
  }
  func.func @transform_0(%arg0: i32) -> i32 {
    %c0_i32 = arith.constant 0 : i32
    %c0_i32_0 = arith.constant 0 : i32
    return %c0_i32 : i32
  }
  func.func @transform_1(%arg0: i32) -> (i32, i32, i32) {
    %c0_i32 = arith.constant 0 : i32
    %c0_i32_0 = arith.constant 0 : i32
    %c0_i32_1 = arith.constant 0 : i32
    return %arg0, %c0_i32, %c0_i32_0 : i32, i32, i32
  }
  func.func @transform_2(%arg0: i32) -> (i32, i32, i32) {
    %c0_i32 = arith.constant 0 : i32
    %c0_i32_0 = arith.constant 0 : i32
    %c0_i32_1 = arith.constant 0 : i32
    return %arg0, %c0_i32, %c0_i32_0 : i32, i32, i32
  }
}

</mosaic_0001>

<llo_original>
// kernel: tpu_custom_call.1
$region0: #{tpu_custom_call.1}
  #allocation0 [shape = 'u32[]', space=smem, size = 0x4, offset = 0x4, fixed_abs, tag = 'smem constant byte address 0x4 - core index']
  #allocation1 [shape = 'u32[144,128]{1,0:T(1,128)}', space=vmem, size = 0x12000, scoped, tag = 'internal scratch']
  %s0 = inlined_call_operand.hbm [shape: f32[3], index: 0, kind: input, shape index: {}]
  %s1 = inlined_call_operand.hbm [shape: f32[2,64,256], index: 1, kind: input, shape index: {}]
  %s2 = inlined_call_operand.hbm [shape: f32[2,64,256], index: 2, kind: output, shape index: {}]
  %s3 = sld [smem:[#allocation0]]
  $region49: #{tpu_custom_call.1} parent=0
    _
  %s5 = ssub.s32 1, %s3
  %s6 = scalar_select 0, %s5, %s3
  $region1: #{tpu_custom_call.1} parent=0
    #allocation2 [shape = 'u8[512]{0}', space=smem, size = 0x200, scoped, tag = 'input window, operand 0, single buffered']
    #allocation3 [shape = 's32[2]{0}', space=sflag, size = 0x8, scoped, tag = 'scoped memory for tpu_custom_call.1']
    #allocation4 [shape = 's32[2]{0}', space=sflag, size = 0x8, scoped, tag = 'scoped memory for tpu_custom_call.1']
    #allocation5 [shape = 's32[2]{0}', space=sflag, size = 0x8, scoped, tag = 'scoped memory for tpu_custom_call.1']
    #allocation6 [shape = 'u8[131072]{0}', space=vmem, size = 0x20000, scoped, tag = 'input window, operand 1']
    #allocation7 [shape = 'u8[131072]{0}', space=vmem, size = 0x20000, scoped, tag = 'output window, operand 0']
    %7 = vsyncpa [#allocation5], 0
    %8 = vsyncpa [#allocation3], 0
    %s9 = scalar_lea.sflag [#allocation3], 1
    %10 = vsyncpa %s9, 0
    %11 = vsyncpa [#allocation4], 0
    %s12 = scalar_lea.sflag [#allocation4], 1
    %13 = vsyncpa %s12, 0
    loop: start=0, step=1, limit=4
    $region2: #{tpu_custom_call.1} parent=1 // loop_pre_header
      _
    $region3: #{tpu_custom_call.1} parent=1 // loop_header
      %s15 = sphi 0, %s19
      %p16 = scmp.ge.s32.totalorder %s15, 4
      %s23 = sphi 0, %s23
      %s25 = sphi 0, %s23
      %s26 = sphi 0, %s25
      %s40 = sphi 0, %s26
      %s46 = sphi 0, %s48
      %s49 = sphi 0, %s46
      %s50 = sphi 0, %s49
      %s66 = sphi 0, %s50
      %s72 = sphi 0, %s74
      %s75 = sphi 0, %s72
      %s76 = sphi 0, %s75
      %s92 = sphi 0, %s76
    $region4: #{tpu_custom_call.1} parent=1 // loop_header_branch
      %18 = sbr.rel (%p16) target = $region8
    $region5: #{tpu_custom_call.1} parent=1 // loop_body
      %s20 = ssub.s32 %s15, 1
      %s21 = ssub.s32 %s15, 2
      %s22 = sadd.s32 %s15, 1
      %s24 = sadd.s32 %s23, 1
      %p27 = scmp.eq.s32.totalorder %s15, 1
      %p28 = scmp.ne.s32.totalorder %s23, %s25
      %p29 = scmp.eq.s32.totalorder %s15, 0
      %p30 = por %p28, %p29
      %p31 = scmp.ne.s32.totalorder %s23, %s25
      %p32 = scmp.eq.s32.totalorder %s20, 1
      %p33 = por %p31, %p32
      %p34 = scmp.ne.s32.totalorder %s25, %s26
      %p35 = scmp.eq.s32.totalorder %s20, 0
      %p36 = por %p34, %p35
      %p37 = scmp.ne.s32.totalorder %s25, %s26
      %p38 = scmp.eq.s32.totalorder %s21, 1
      %p39 = por %p37, %p38
      %p41 = scmp.ne.s32.totalorder %s26, %s40
      %p42 = scmp.eq.s32.totalorder %s21, 0
      %p43 = por %p41, %p42
      %s44 = ssub.s32 %s15, %s22
      %p45 = scmp.eq.s32.totalorder %s44, 0
      %s47 = sadd.s32 %s46, 1
      %s48 = scalar_select %p45, %s46, %s47
      %p51 = pneg %p45
      %p52 = scmp.eq.s32.totalorder %s15, 1
      %p53 = por %p51, %p52
      %p54 = scmp.ne.s32.totalorder %s46, %s49
      %p55 = scmp.eq.s32.totalorder %s15, 0
      %p56 = por %p54, %p55
      %p57 = scmp.ne.s32.totalorder %s46, %s49
      %p58 = scmp.eq.s32.totalorder %s20, 1
      %p59 = por %p57, %p58
      %p60 = scmp.ne.s32.totalorder %s49, %s50
      %p61 = scmp.eq.s32.totalorder %s20, 0
      %p62 = por %p60, %p61
      %p63 = scmp.ne.s32.totalorder %s49, %s50
      %p64 = scmp.eq.s32.totalorder %s21, 1
      %p65 = por %p63, %p64
      %p67 = scmp.ne.s32.totalorder %s50, %s66
      %p68 = scmp.eq.s32.totalorder %s21, 0
      %p69 = por %p67, %p68
      %s70 = ssub.s32 %s15, %s22
      %p71 = scmp.eq.s32.totalorder %s70, 0
      %s73 = sadd.s32 %s72, 1
      %s74 = scalar_select %p71, %s72, %s73
      %p77 = pneg %p71
      %p78 = scmp.eq.s32.totalorder %s15, 1
      %p79 = por %p77, %p78
      %p80 = scmp.ne.s32.totalorder %s72, %s75
      %p81 = scmp.eq.s32.totalorder %s15, 0
      %p82 = por %p80, %p81
      %p83 = scmp.ne.s32.totalorder %s72, %s75
      %p84 = scmp.eq.s32.totalorder %s20, 1
      %p85 = por %p83, %p84
      %p86 = scmp.ne.s32.totalorder %s75, %s76
      %p87 = scmp.eq.s32.totalorder %s20, 0
      %p88 = por %p86, %p87
      %p89 = scmp.ne.s32.totalorder %s75, %s76
      %p90 = scmp.eq.s32.totalorder %s21, 1
      %p91 = por %p89, %p90
      %p93 = scmp.ne.s32.totalorder %s76, %s92
      %p94 = scmp.eq.s32.totalorder %s21, 0
      %p95 = por %p93, %p94
      %p96 = scmp.le.s32.totalorder 1, %s15
      %p97 = scmp.lt.s32.totalorder %s15, 3
      %p98 = pnand %p96, %p97
      %p99 = pneg %p98
      // Predicated region
      $region9: #{tpu_custom_call.1} parent=5 // pred_check
        _
      $region10: #{tpu_custom_call.1} parent=5 // pred_check_branch
        %101 = sbr.rel (%p98) target = $region12
      $region11: #{tpu_custom_call.1} parent=5 // pred_region
        %s102 = ssub.s32 %s15, 1
        // Predicated region
        $region13: #{tpu_custom_call.1} parent=11 // pred_check
          %p103 = pneg %p36
        $region14: #{tpu_custom_call.1} parent=11 // pred_check_branch
          %105 = sbr.rel (%p103) target = $region16
        $region15: #{tpu_custom_call.1} parent=11 // pred_region
          %s107 = ssub.s32 16, 16
          %108 = vsyncadd [#allocation5], %s107
          %111 = dma.hbm_to_smem %s0, 16, [#allocation2], [#allocation5]
        $region16: #{tpu_custom_call.1} parent=11 // pred_fallthru
          _
      $region12: #{tpu_custom_call.1} parent=5 // pred_fallthru
        _
      %p112 = scmp.lt.s32.totalorder %s15, 2
      // Predicated region
      $region17: #{tpu_custom_call.1} parent=5 // pred_check
        %p113 = pneg %p112
      $region18: #{tpu_custom_call.1} parent=5 // pred_check_branch
        %115 = sbr.rel (%p113) target = $region20
      $region19: #{tpu_custom_call.1} parent=5 // pred_region
        // Predicated region
        $region21: #{tpu_custom_call.1} parent=19 // pred_check
          %p116 = pneg %p56
        $region22: #{tpu_custom_call.1} parent=19 // pred_check_branch
          %118 = sbr.rel (%p116) target = $region24
        $region23: #{tpu_custom_call.1} parent=19 // pred_region
          %s119 = sand.u32 %s46, 1
          %s120 = scalar_lea.sflag [#allocation3], %s119
          %s121 = sand.u32 %s46, 1
          %s122 = smul.addr %s121, 128
          %s123 = scalar_lea.vmem [#allocation6], %s122
          %s125 = ssub.s32 2048, 2048
          %126 = vsyncadd %s120, %s125
          %s127 = smul.addr %s15, 16
          %s128 = smul.addr %s127, 128
          %s129 = scalar_lea.hbm %s1, %s128
          %s130 = sshll.u32 %s123, 4
          %s131 = int_to_ptr.vmem [resolvable:$true] %s130
          %136 = dma.hbm_to_vmem [thread:$0]  %s129, 2048, %s131, %s120, 256, 256, 16
        $region24: #{tpu_custom_call.1} parent=19 // pred_fallthru
          _
      $region20: #{tpu_custom_call.1} parent=5 // pred_fallthru
        _
      %p137 = scmp.le.s32.totalorder 1, %s15
      %p138 = scmp.lt.s32.totalorder %s15, 3
      %p139 = pnand %p137, %p138
      %p140 = pneg %p139
      // Predicated region
      $region25: #{tpu_custom_call.1} parent=5 // pred_check
        _
      $region26: #{tpu_custom_call.1} parent=5 // pred_check_branch
        %142 = sbr.rel (%p139) target = $region28
      $region27: #{tpu_custom_call.1} parent=5 // pred_region
        %s143 = ssub.s32 %s15, 1
        // Predicated region
        $region29: #{tpu_custom_call.1} parent=27 // pred_check
          %p144 = pneg %p36
        $region30: #{tpu_custom_call.1} parent=27 // pred_check_branch
          %146 = sbr.rel (%p144) target = $region32
        $region31: #{tpu_custom_call.1} parent=27 // pred_region
          %147 = dma.done [#allocation5], 16
        $region32: #{tpu_custom_call.1} parent=27 // pred_fallthru
          _
        %s148 = sand.u32 %s49, 1
        %s149 = scalar_lea.sflag [#allocation3], %s148
        %s150 = sand.u32 %s49, 1
        %s151 = smul.addr %s150, 128
        %s152 = scalar_lea.vmem [#allocation6], %s151
        // Predicated region
        $region33: #{tpu_custom_call.1} parent=27 // pred_check
          %p153 = pneg %p62
        $region34: #{tpu_custom_call.1} parent=27 // pred_check_branch
          %155 = sbr.rel (%p153) target = $region36
        $region35: #{tpu_custom_call.1} parent=27 // pred_region
          %156 = dma.done %s149, 2048
        $region36: #{tpu_custom_call.1} parent=27 // pred_fallthru
          _
        %157 = sfence
        %p158 = pneg %p36
        %p159 = pneg %p33
        %s160 = sand.u32 %s49, 1
        %s161 = scalar_lea.sflag [#allocation3], %s160
        %s162 = sand.u32 %s49, 1
        %s163 = smul.addr %s162, 128
        %s164 = scalar_lea.vmem [#allocation6], %s163
        %p165 = pneg %p62
        %p166 = pneg %p59
        %p167 = pneg %p88
        %p168 = pneg %p85
        %s169 = sand.u32 %s75, 1
        %s170 = scalar_lea.sflag [#allocation4], %s169
        %s171 = sand.u32 %s75, 1
        %s172 = smul.addr %s171, 128
        %s173 = scalar_lea.vmem [#allocation7], %s172
        %v174 = vld [vmem:[%s152] sm:$0xff]
        %v175 = vld [vmem:[%s152 + $0x8] sm:$0xff]
        %v176 = vld [vmem:[%s152 + $0x10] sm:$0xff]
        %v177 = vld [vmem:[%s152 + $0x18] sm:$0xff]
        %v178 = vld [vmem:[%s152 + $0x20] sm:$0xff]
        %v179 = vld [vmem:[%s152 + $0x28] sm:$0xff]
        %v180 = vld [vmem:[%s152 + $0x30] sm:$0xff]
        %v181 = vld [vmem:[%s152 + $0x38] sm:$0xff]
        %v182 = vld [vmem:[%s152 + $0x40] sm:$0xff]
        %v183 = vld [vmem:[%s152 + $0x48] sm:$0xff]
        %v184 = vld [vmem:[%s152 + $0x50] sm:$0xff]
        %v185 = vld [vmem:[%s152 + $0x58] sm:$0xff]
        %v186 = vld [vmem:[%s152 + $0x60] sm:$0xff]
        %v187 = vld [vmem:[%s152 + $0x68] sm:$0xff]
        %v188 = vld [vmem:[%s152 + $0x70] sm:$0xff]
        %v189 = vld [vmem:[%s152 + $0x78] sm:$0xff]
        %v190 = vadd.f32 %v174, %v175
        %191 = vadd.xlane.f32.xlu0 %v190
        %v192 = vpop.xlane.xlu0 %191
        %v193 = vadd.f32 %v176, %v177
        %194 = vadd.xlane.f32.xlu0 %v193
        %v195 = vpop.xlane.xlu0 %194
        %v196 = vadd.f32 %v178, %v179
        %197 = vadd.xlane.f32.xlu0 %v196
        %v198 = vpop.xlane.xlu0 %197
        %v199 = vadd.f32 %v180, %v181
        %200 = vadd.xlane.f32.xlu0 %v199
        %v201 = vpop.xlane.xlu0 %200
        %v202 = vadd.f32 %v182, %v183
        %203 = vadd.xlane.f32.xlu0 %v202
        %v204 = vpop.xlane.xlu0 %203
        %v205 = vadd.f32 %v184, %v185
        %206 = vadd.xlane.f32.xlu0 %v205
        %v207 = vpop.xlane.xlu0 %206
        %v208 = vadd.f32 %v186, %v187
        %209 = vadd.xlane.f32.xlu0 %v208
        %v210 = vpop.xlane.xlu0 %209
        %v211 = vadd.f32 %v188, %v189
        %212 = vadd.xlane.f32.xlu0 %v211
        %v213 = vpop.xlane.xlu0 %212
        %v214 = vmul.f32 %v192, 0.00390625
        %v215 = vmul.f32 %v195, 0.00390625
        %v216 = vmul.f32 %v198, 0.00390625
        %v217 = vmul.f32 %v201, 0.00390625
        %v218 = vmul.f32 %v204, 0.00390625
        %v219 = vmul.f32 %v207, 0.00390625
        %v220 = vmul.f32 %v210, 0.00390625
        %v221 = vmul.f32 %v213, 0.00390625
        %vm230 = vcmask 1040384
        %v231 = vrot.slane %v214, 7
        %v232 = vrot.slane %v215, 7
        %v233 = vsel %vm230, %v231, %v232
        %v234 = vrot.slane %v216, 7
        %v235 = vsel %vm230, %v232, %v234
        %v236 = vrot.slane %v217, 7
        %v237 = vsel %vm230, %v234, %v236
        %v238 = vrot.slane %v218, 7
        %v239 = vsel %vm230, %v236, %v238
        %v240 = vrot.slane %v219, 7
        %v241 = vsel %vm230, %v238, %v240
        %v242 = vrot.slane %v220, 7
        %v243 = vsel %vm230, %v240, %v242
        %v244 = vrot.slane %v221, 7
        %v245 = vsel %vm230, %v242, %v244
        %v255 = vsel %vm230, 0.0, %v231
        %v256 = vsel %vm230, %v244, 0.0
        %s257 = sld [smem:[#allocation2]]
        %v258 = vstv %s257
        %v259 = vmul.f32 %v258, %v255
        %v260 = vmul.f32 %v258, %v233
        %v261 = vmul.f32 %v258, %v235
        %v262 = vmul.f32 %v258, %v237
        %v263 = vmul.f32 %v258, %v239
        %v264 = vmul.f32 %v258, %v241
        %v265 = vmul.f32 %v258, %v243
        %v266 = vmul.f32 %v258, %v245
        %s267 = sld [smem:[#allocation2 + $0x1]]
        %v268 = vstv %s267
        %v269 = vmul.f32 %v268, %v255
        %v270 = vmul.f32 %v268, %v233
        %v271 = vmul.f32 %v268, %v235
        %v272 = vmul.f32 %v268, %v237
        %v273 = vmul.f32 %v268, %v239
        %v274 = vmul.f32 %v268, %v241
        %v275 = vmul.f32 %v268, %v243
        %v276 = vmul.f32 %v268, %v245
        %v277 = vmul.f32 %v268, %v256
        %vm287 = vcmask 1046528
        %v288 = vrot.slane %v269, 1
        %v289 = vrot.slane %v270, 1
        %v290 = vsel %vm287, %v288, %v289
        %v291 = vrot.slane %v271, 1
        %v292 = vsel %vm287, %v289, %v291
        %v293 = vrot.slane %v272, 1
        %v294 = vsel %vm287, %v291, %v293
        %v295 = vrot.slane %v273, 1
        %v296 = vsel %vm287, %v293, %v295
        %v297 = vrot.slane %v274, 1
        %v298 = vsel %vm287, %v295, %v297
        %v299 = vrot.slane %v275, 1
        %v300 = vsel %vm287, %v297, %v299
        %v301 = vrot.slane %v276, 1
        %v302 = vsel %vm287, %v299, %v301
        %v303 = vrot.slane %v277, 1
        %v304 = vsel %vm287, %v301, %v303
        %v313 = vadd.f32 %v259, %v290
        %v314 = vadd.f32 %v260, %v292
        %v315 = vadd.f32 %v261, %v294
        %v316 = vadd.f32 %v262, %v296
        %v317 = vadd.f32 %v263, %v298
        %v318 = vadd.f32 %v264, %v300
        %v319 = vadd.f32 %v265, %v302
        %v320 = vadd.f32 %v266, %v304
        %s321 = sld [smem:[#allocation2 + $0x2]]
        %v322 = vstv %s321
        %v323 = vmul.f32 %v322, %v255
        %v324 = vmul.f32 %v322, %v233
        %v325 = vmul.f32 %v322, %v235
        %v326 = vmul.f32 %v322, %v237
        %v327 = vmul.f32 %v322, %v239
        %v328 = vmul.f32 %v322, %v241
        %v329 = vmul.f32 %v322, %v243
        %v330 = vmul.f32 %v322, %v245
        %v331 = vmul.f32 %v322, %v256
        %vm341 = vcmask 1045504
        %v342 = vrot.slane %v323, 2
        %v343 = vrot.slane %v324, 2
        %v344 = vsel %vm341, %v342, %v343
        %v345 = vrot.slane %v325, 2
        %v346 = vsel %vm341, %v343, %v345
        %v347 = vrot.slane %v326, 2
        %v348 = vsel %vm341, %v345, %v347
        %v349 = vrot.slane %v327, 2
        %v350 = vsel %vm341, %v347, %v349
        %v351 = vrot.slane %v328, 2
        %v352 = vsel %vm341, %v349, %v351
        %v353 = vrot.slane %v329, 2
        %v354 = vsel %vm341, %v351, %v353
        %v355 = vrot.slane %v330, 2
        %v356 = vsel %vm341, %v353, %v355
        %v357 = vrot.slane %v331, 2
        %v358 = vsel %vm341, %v355, %v357
        %v367 = vadd.f32 %v313, %v344
        %v368 = vadd.f32 %v314, %v346
        %v369 = vadd.f32 %v315, %v348
        %v370 = vadd.f32 %v316, %v350
        %v371 = vadd.f32 %v317, %v352
        %v372 = vadd.f32 %v318, %v354
        %v373 = vadd.f32 %v319, %v356
        %v374 = vadd.f32 %v320, %v358
        %v375 = vxor.u32 %v367, 2147483648
        %v376 = vxor.u32 %v368, 2147483648
        %v377 = vxor.u32 %v369, 2147483648
        %v378 = vxor.u32 %v370, 2147483648
        %v379 = vxor.u32 %v371, 2147483648
        %v380 = vxor.u32 %v372, 2147483648
        %v381 = vxor.u32 %v373, 2147483648
        %v382 = vxor.u32 %v374, 2147483648
        %v383 = vmul.f32 %v375, 1.442695
        %v384 = vpow.pop %v383
        %v385 = vmul.f32 %v376, 1.442695
        %v386 = vpow.pop %v385
        %v387 = vmul.f32 %v377, 1.442695
        %v388 = vpow.pop %v387
        %v389 = vmul.f32 %v378, 1.442695
        %v390 = vpow.pop %v389
        %v391 = vmul.f32 %v379, 1.442695
        %v392 = vpow.pop %v391
        %v393 = vmul.f32 %v380, 1.442695
        %v394 = vpow.pop %v393
        %v395 = vmul.f32 %v381, 1.442695
        %v396 = vpow.pop %v395
        %v397 = vmul.f32 %v382, 1.442695
        %v398 = vpow.pop %v397
        %v399 = vadd.f32 %v384, 1.0
        %v400 = vadd.f32 %v386, 1.0
        %v401 = vadd.f32 %v388, 1.0
        %v402 = vadd.f32 %v390, 1.0
        %v403 = vadd.f32 %v392, 1.0
        %v404 = vadd.f32 %v394, 1.0
        %v405 = vadd.f32 %v396, 1.0
        %v406 = vadd.f32 %v398, 1.0
        %v407 = vrcp.pop %v399
        %v408 = vmul.f32 1.0, %v407
        %v409 = vrcp.pop %v400
        %v410 = vmul.f32 1.0, %v409
        %v411 = vrcp.pop %v401
        %v412 = vmul.f32 1.0, %v411
        %v413 = vrcp.pop %v402
        %v414 = vmul.f32 1.0, %v413
        %v415 = vrcp.pop %v403
        %v416 = vmul.f32 1.0, %v415
        %v417 = vrcp.pop %v404
        %v418 = vmul.f32 1.0, %v417
        %v419 = vrcp.pop %v405
        %v420 = vmul.f32 1.0, %v419
        %v421 = vrcp.pop %v406
        %v422 = vmul.f32 1.0, %v421
        %424 = vset.pattern.permute.xlu0 0
        %425 = vperm.xlu0 %424, %v408
        %v426 = vpop.permute.xlu0 %425
        %429 = vset.pattern.permute.xlu0 0
        %430 = vperm.xlu0 %429, %v410
        %v431 = vpop.permute.xlu0 %430
        %434 = vset.pattern.permute.xlu0 0
        %435 = vperm.xlu0 %434, %v412
        %v436 = vpop.permute.xlu0 %435
        %439 = vset.pattern.permute.xlu0 0
        %440 = vperm.xlu0 %439, %v414
        %v441 = vpop.permute.xlu0 %440
        %444 = vset.pattern.permute.xlu0 0
        %445 = vperm.xlu0 %444, %v416
        %v446 = vpop.permute.xlu0 %445
        %449 = vset.pattern.permute.xlu0 0
        %450 = vperm.xlu0 %449, %v418
        %v451 = vpop.permute.xlu0 %450
        %454 = vset.pattern.permute.xlu0 0
        %455 = vperm.xlu0 %454, %v420
        %v456 = vpop.permute.xlu0 %455
        %459 = vset.pattern.permute.xlu0 0
        %460 = vperm.xlu0 %459, %v422
        %v461 = vpop.permute.xlu0 %460
        %v463 = vmul.f32 %v174, %v426
        %v464 = vmul.f32 %v175, %v426
        %v465 = vmul.f32 %v176, %v431
        %v466 = vmul.f32 %v177, %v431
        %v467 = vmul.f32 %v178, %v436
        %v468 = vmul.f32 %v179, %v436
        %v469 = vmul.f32 %v180, %v441
        %v470 = vmul.f32 %v181, %v441
        %v471 = vmul.f32 %v182, %v446
        %v472 = vmul.f32 %v183, %v446
        %v473 = vmul.f32 %v184, %v451
        %v474 = vmul.f32 %v185, %v451
        %v475 = vmul.f32 %v186, %v456
        %v476 = vmul.f32 %v187, %v456
        %v477 = vmul.f32 %v188, %v461
        %v478 = vmul.f32 %v189, %v461
        %479 = vst [vmem:[%s173] sm:$0xff] %v463
        %480 = vst [vmem:[%s173 + $0x8] sm:$0xff] %v464
        %481 = vst [vmem:[%s173 + $0x10] sm:$0xff] %v465
        %482 = vst [vmem:[%s173 + $0x18] sm:$0xff] %v466
        %483 = vst [vmem:[%s173 + $0x20] sm:$0xff] %v467
        %484 = vst [vmem:[%s173 + $0x28] sm:$0xff] %v468
        %485 = vst [vmem:[%s173 + $0x30] sm:$0xff] %v469
        %486 = vst [vmem:[%s173 + $0x38] sm:$0xff] %v470
        %487 = vst [vmem:[%s173 + $0x40] sm:$0xff] %v471
        %488 = vst [vmem:[%s173 + $0x48] sm:$0xff] %v472
        %489 = vst [vmem:[%s173 + $0x50] sm:$0xff] %v473
        %490 = vst [vmem:[%s173 + $0x58] sm:$0xff] %v474
        %491 = vst [vmem:[%s173 + $0x60] sm:$0xff] %v475
        %492 = vst [vmem:[%s173 + $0x68] sm:$0xff] %v476
        %493 = vst [vmem:[%s173 + $0x70] sm:$0xff] %v477
        %494 = vst [vmem:[%s173 + $0x78] sm:$0xff] %v478
        %s495 = sand.u32 %s75, 1
        %s496 = scalar_lea.sflag [#allocation4], %s495
        %s497 = sand.u32 %s75, 1
        %s498 = smul.addr %s497, 128
        %s499 = scalar_lea.vmem [#allocation7], %s498
        // Predicated region
        $region37: #{tpu_custom_call.1} parent=27 // pred_check
          %p500 = pneg %p85
        $region38: #{tpu_custom_call.1} parent=27 // pred_check_branch
          %502 = sbr.rel (%p500) target = $region40
        $region39: #{tpu_custom_call.1} parent=27 // pred_region
          %s504 = ssub.s32 2048, 2048
          %505 = vsyncadd %s496, %s504
          %s506 = smul.addr %s20, 16
          %s507 = smul.addr %s506, 128
          %s508 = scalar_lea.hbm %s2, %s507
          %s509 = sshll.u32 %s499, 4
          %s510 = int_to_ptr.vmem [resolvable:$true] %s509
          %515 = dma.vmem_to_hbm [thread:$0]  %s510, 2048, %s508, %s496, 256, 256, 16
        $region40: #{tpu_custom_call.1} parent=27 // pred_fallthru
          _
      $region28: #{tpu_custom_call.1} parent=5 // pred_fallthru
        _
      %p516 = scmp.le.s32.totalorder 2, %s15
      // Predicated region
      $region41: #{tpu_custom_call.1} parent=5 // pred_check
        %p517 = pneg %p516
      $region42: #{tpu_custom_call.1} parent=5 // pred_check_branch
        %519 = sbr.rel (%p517) target = $region44
      $region43: #{tpu_custom_call.1} parent=5 // pred_region
        %s520 = ssub.s32 %s15, 2
        // Predicated region
        $region45: #{tpu_custom_call.1} parent=43 // pred_check
          %p521 = pneg %p91
        $region46: #{tpu_custom_call.1} parent=43 // pred_check_branch
          %523 = sbr.rel (%p521) target = $region48
        $region47: #{tpu_custom_call.1} parent=43 // pred_region
          %s524 = sand.u32 %s76, 1
          %s525 = scalar_lea.sflag [#allocation4], %s524
          %s526 = sand.u32 %s76, 1
          %s527 = smul.addr %s526, 128
          %s528 = scalar_lea.vmem [#allocation7], %s527
          %529 = dma.done %s525, 2048
        $region48: #{tpu_custom_call.1} parent=43 // pred_fallthru
          _
      $region44: #{tpu_custom_call.1} parent=5 // pred_fallthru
        _
    $region6: #{tpu_custom_call.1} parent=1 // loop_footer
      %s19 = sadd.s32 1, %s15
    $region7: #{tpu_custom_call.1} parent=1 // loop_footer_branch
      %14 = sbr.rel target = $region3
    $region8: #{tpu_custom_call.1} parent=1 // loop_exit
      _
    %530 = vsyncpa [#allocation3], 1
    %s531 = scalar_lea.sflag [#allocation3], 1
    %532 = vsyncpa %s531, 1
    %533 = vsyncpa [#allocation4], 1
    %s534 = scalar_lea.sflag [#allocation4], 1
    %535 = vsyncpa %s534, 1
    %536 = vsyncpa [#allocation5], 1
    %s537 = scalar_lea.sflag [#allocation5], 1
    %538 = vsyncpa %s537, 1

</llo_original>
